<compile_context>
chip_gen: v7x
topology: tpu7x:2x2x1
jax: 0.10.0
libtpu: 0.0.40
codegen_flags: <defaults>
</compile_context>

<pallas_src>
import jax
import jax.numpy as jnp
from jax import lax
from jax.experimental import pallas as pl
from jax.experimental.pallas import tpu as pltpu

EPS = 1e-12  # torch.nn.functional.normalize default eps


def netvlad_kernel(x_ref, w_ref, b_ref, cent_ref, out_ref, acc_ref, asum_ref):
    # Grid: (batch item n, pixel tile p).  Per step:
    #   x_ref   : (C, tp)   channels on sublane, pixel tile on lane
    #   w_ref   : (K, C)    1x1-conv weight (squeezed)
    #   b_ref   : (K, 1)    1x1-conv bias
    #   cent_ref: (K, C)    cluster centroids
    #   out_ref : (K, C)    per-cluster, per-channel VLAD (written on last p)
    #   acc_ref : (K, C) f32 scratch  -- sum_p a[k,p] * x[c,p]
    #   asum_ref: (K, 1) f32 scratch  -- sum_p a[k,p]
    p = pl.program_id(1)

    @pl.when(p == 0)
    def _():
        acc_ref[...] = jnp.zeros_like(acc_ref)
        asum_ref[...] = jnp.zeros_like(asum_ref)

    x = x_ref[...]                                              # (C, tp), native dtype
    b = b_ref[...].astype(jnp.float32)                          # (K, 1)

    # --- 1x1 conv: logits[k,p] = sum_c w[k,c] * x[c,p]  (contract C on MXU) ---
    logits = lax.dot_general(
        w_ref[...], x, (((1,), (0,)), ((), ())),
        preferred_element_type=jnp.float32) + b                 # (K, tp) f32

    # --- softmax over clusters (K on the sublane axis, per-pixel) ---
    m = jnp.max(logits, axis=0, keepdims=True)                  # (1, tp)
    e = jnp.exp(logits - m)                                     # (K, tp)
    denom = jnp.sum(e, axis=0, keepdims=True)                   # (1, tp)
    a = e * pl.reciprocal(denom, approx=False)                  # (K, tp) f32

    # --- partial VLAD sums for this pixel tile ---
    # acc[k,c] += sum_p a[k,p] * x[c,p]   (contract pixel tile on MXU)
    acc_ref[...] += lax.dot_general(
        a.astype(x.dtype), x, (((1,), (1,)), ((), ())),
        preferred_element_type=jnp.float32)                     # (K, C)
    asum_ref[...] += jnp.sum(a, axis=1, keepdims=True)          # (K, 1)

    # --- finalize on the last pixel tile ---
    @pl.when(p == pl.num_programs(1) - 1)
    def _():
        cent = cent_ref[...].astype(jnp.float32)                # (K, C)
        # vlad[k,c] = sum_p a[k,p]*x[c,p] - (sum_p a[k,p]) * cent[k,c]
        vlad = acc_ref[...] - asum_ref[...] * cent              # (K, C) f32

        # intra-normalization over channels (F.normalize dim=2):
        # max(sqrt(s), eps) == sqrt(max(s, eps^2))  ->  rsqrt (EUP) + multiply
        ssq_c = jnp.sum(vlad * vlad, axis=1, keepdims=True)     # (K, 1)
        vlad = vlad * lax.rsqrt(jnp.maximum(ssq_c, EPS * EPS))

        # global L2 normalization over the flattened (K*C) vector
        ssq_g = jnp.sum(vlad * vlad, keepdims=True)             # (1, 1)
        vlad = vlad * lax.rsqrt(jnp.maximum(ssq_g, EPS * EPS))

        out_ref[...] = vlad.astype(out_ref.dtype)


def _choose_tile_p(P, cap=4096):
    """Largest pixel tile that divides P and is a multiple of 128 (Mosaic lane
    constraint), capped so per-step blocks stay comfortably in VMEM.  If P is
    already small, or no 128-multiple divisor exists, use all of P."""
    if P <= cap:
        return P
    t = (cap // 128) * 128
    while t >= 128:
        if P % t == 0:
            return t
        t -= 128
    # TODO(synk): pad P to a multiple of 128 (with pixel masking) for shapes
    # with no 128-multiple divisor; falling back to the whole P keeps
    # correctness but can exceed VMEM for extremely large feature maps.
    return P


def netvlad_forward(x_nchw, conv_w, conv_b, centroids, tile_p=None):
    """x_nchw: (N, C, H, W). conv_w: (K, C). conv_b: (K,). centroids: (K, C)."""
    N, C, H, W = x_nchw.shape
    K = conv_w.shape[0]
    P = H * W

    # Free reshape only (no transpose, no extra HBM pass): NCHW -> (N, C, P).
    x_ncp = x_nchw.reshape(N, C, P)
    b2d = conv_b.reshape(K, 1)

    if tile_p is None:
        tile_p = _choose_tile_p(P)
    assert P % tile_p == 0, "tile_p must divide H*W"
    num_p = P // tile_p

    # VMEM budget: double-buffered x/out blocks + f32 softmax intermediates +
    # params + scratch, floored at 16 MiB (v5e default scoped VMEM) and capped
    # at 64 MiB (v7x physical VMEM).
    itemsize = jnp.dtype(x_ncp.dtype).itemsize
    x_blk = C * tile_p * itemsize
    out_blk = K * C * 4
    params = (2 * K * C + K) * 4
    interm = (4 * K * tile_p + 2 * K * C) * 4
    scratch = (K * C + K) * 4
    vmem_limit = int(min(max(2 * (x_blk + out_blk) + params + interm + scratch
                             + (4 << 20), 16 << 20), 64 << 20))

    out = pl.pallas_call(
        netvlad_kernel,
        out_shape=jax.ShapeDtypeStruct((N, K, C), jnp.float32),
        grid_spec=pltpu.PrefetchScalarGridSpec(
            num_scalar_prefetch=0,
            grid=(N, num_p),
            in_specs=[
                pl.BlockSpec((None, C, tile_p), lambda n, p: (n, 0, p)),
                pl.BlockSpec((K, C), lambda n, p: (0, 0)),
                pl.BlockSpec((K, 1), lambda n, p: (0, 0)),
                pl.BlockSpec((K, C), lambda n, p: (0, 0)),
            ],
            out_specs=pl.BlockSpec((None, K, C), lambda n, p: (n, 0, 0)),
            scratch_shapes=[
                pltpu.VMEM((K, C), jnp.float32),   # acc
                pltpu.VMEM((K, 1), jnp.float32),   # asum
            ],
        ),
        compiler_params=pltpu.CompilerParams(
            dimension_semantics=("parallel", "arbitrary"),
            vmem_limit_bytes=vmem_limit,
        ),
    )(x_ncp, conv_w, b2d, centroids)

    # Free contiguous reshape to the module's (N, K*C) output.
    return out.reshape(N, K * C)


def netvlad_reference(x_nchw, conv_w, conv_b, centroids):
    """Pure-JAX reference mirroring the PyTorch forward exactly."""
    N, C, H, W = x_nchw.shape
    K = conv_w.shape[0]
    x_flat = x_nchw.reshape(N, C, H * W)                                  # (N, C, P)
    soft = jnp.einsum('kc,ncp->nkp', conv_w, x_flat) + conv_b[None, :, None]
    soft = jax.nn.softmax(soft, axis=1)                                   # (N, K, P)
    x_perm = jnp.transpose(x_flat, (0, 2, 1))                             # (N, P, C)
    residual = x_perm[:, None, :, :] - centroids[None, :, None, :]        # (N, K, P, C)
    vlad = jnp.sum(soft[..., None] * residual, axis=2)                    # (N, K, C)
    vlad = vlad / jnp.maximum(
        jnp.linalg.norm(vlad, axis=2, keepdims=True), EPS)
    vlad = vlad.reshape(N, -1)
    vlad = vlad / jnp.maximum(
        jnp.linalg.norm(vlad, axis=1, keepdims=True), EPS)
    return vlad


if __name__ == "__main__":
    key = jax.random.PRNGKey(0)
    kx, kw, kb, kc, kx2 = jax.random.split(key, 5)

    # Small shapes consistent with the module (num_clusters=K, dim=C).
    N, C, H, W = 2, 32, 8, 8
    K = 8
    x = jax.random.normal(kx, (N, C, H, W), dtype=jnp.float32)
    conv_w = jax.random.normal(kw, (K, C), dtype=jnp.float32) * 0.1   # Conv2d (K,C,1,1) squeezed
    conv_b = jax.random.normal(kb, (K,), dtype=jnp.float32) * 0.1
    centroids = jax.random.uniform(kc, (K, C), dtype=jnp.float32)     # torch.rand-like init

    out = netvlad_forward(x, conv_w, conv_b, centroids)
    jax.block_until_ready(out)
    ref = netvlad_reference(x, conv_w, conv_b, centroids)
    assert out.shape == (N, K * C)
    assert jnp.allclose(out, ref, atol=1e-5, rtol=1e-5), "mismatch vs reference"

    # Second config exercises the multi-step pixel-tile accumulation path.
    H2 = W2 = 16                                                       # P = 256, 2 tiles of 128
    x2 = jax.random.normal(kx2, (N, C, H2, W2), dtype=jnp.float32)
    out2 = netvlad_forward(x2, conv_w, conv_b, centroids, tile_p=128)
    jax.block_until_ready(out2)
    ref2 = netvlad_reference(x2, conv_w, conv_b, centroids)
    assert jnp.allclose(out2, ref2, atol=1e-5, rtol=1e-5), "mismatch vs reference (tiled P)"

    print("KERNEL_OK")
</pallas_src>

<mosaic_0001>
module attributes {stable_mosaic.version = 11 : i64} {
  func.func @netvlad_kernel(%arg0: i32, %arg1: i32, %arg2: memref<1x32x64xf32, #tpu.memory_space<vmem>>, %arg3: memref<8x32xf32, #tpu.memory_space<vmem>>, %arg4: memref<8x1xf32, #tpu.memory_space<vmem>>, %arg5: memref<8x32xf32, #tpu.memory_space<vmem>>, %arg6: memref<1x8x32xf32, #tpu.memory_space<vmem>>, %arg7: memref<8x32xf32, #tpu.memory_space<vmem>>, %arg8: memref<8x1xf32, #tpu.memory_space<vmem>>) attributes {dimension_semantics = [#tpu.dimension_semantics<parallel>, #tpu.dimension_semantics<arbitrary>], iteration_bounds = array<i64: 2, 1>, scalar_prefetch = 0 : i64, scratch_operands = 2 : i64, tpu.core_type = #tpu.core_type<tc>, window_params = [{transform_indices = @transform_0, window_bounds = array<i64: 1, 32, 64>}, {pipeline_mode = #tpu.pipeline_mode<synchronous>, transform_indices = @transform_1, window_bounds = array<i64: 8, 32>}, {pipeline_mode = #tpu.pipeline_mode<synchronous>, transform_indices = @transform_2, window_bounds = array<i64: 8, 1>}, {pipeline_mode = #tpu.pipeline_mode<synchronous>, transform_indices = @transform_3, window_bounds = array<i64: 8, 32>}, {transform_indices = @transform_4, window_bounds = array<i64: 1, 8, 32>}]} {
    %c0_i32 = arith.constant 0 : i32
    %0 = arith.cmpi eq, %arg1, %c0_i32 : i32
    %1 = arith.extui %0 : i1 to i32
    %c0_i32_0 = arith.constant 0 : i32
    %2 = arith.cmpi ne, %1, %c0_i32_0 : i32
    scf.if %2 {
      %cst_21 = arith.constant 0.000000e+00 : f32
      %32 = vector.broadcast %cst_21 : f32 to vector<8x32xf32>
      %c0_22 = arith.constant 0 : index
      %c0_23 = arith.constant 0 : index
      %33 = vector.load %arg7[%c0_22, %c0_23] : memref<8x32xf32, #tpu.memory_space<vmem>>, vector<8x32xf32>
      tpu.vector_store %arg7[%c0_22, %c0_23], %32 {strides = array<i32>} : memref<8x32xf32, #tpu.memory_space<vmem>>, vector<8x32xf32>,
      %cst_24 = arith.constant 0.000000e+00 : f32
      %34 = vector.broadcast %cst_24 : f32 to vector<8x1xf32>
      %c0_25 = arith.constant 0 : index
      %c0_26 = arith.constant 0 : index
      %35 = vector.load %arg8[%c0_25, %c0_26] : memref<8x1xf32, #tpu.memory_space<vmem>>, vector<8x1xf32>
      tpu.vector_store %arg8[%c0_25, %c0_26], %34 {strides = array<i32>} : memref<8x1xf32, #tpu.memory_space<vmem>>, vector<8x1xf32>,
    } else {
    }
    %c0 = arith.constant 0 : index
    %c0_1 = arith.constant 0 : index
    %c0_2 = arith.constant 0 : index
    %3 = vector.load %arg2[%c0, %c0_1, %c0_2] : memref<1x32x64xf32, #tpu.memory_space<vmem>>, vector<1x32x64xf32>
    %4 = vector.shape_cast %3 : vector<1x32x64xf32> to vector<32x64xf32>
    %c0_3 = arith.constant 0 : index
    %c0_4 = arith.constant 0 : index
    %5 = vector.load %arg4[%c0_3, %c0_4] : memref<8x1xf32, #tpu.memory_space<vmem>>, vector<8x1xf32>
    %c0_5 = arith.constant 0 : index
    %c0_6 = arith.constant 0 : index
    %6 = vector.load %arg3[%c0_5, %c0_6] : memref<8x32xf32, #tpu.memory_space<vmem>>, vector<8x32xf32>
    %cst = arith.constant dense<0.000000e+00> : vector<8x64xf32>
    %7 = tpu.matmul %6, %4, %cst {dimension_numbers = #tpu.dot_dimension_numbers<[1], [0], [0], [1], [0, 0, 1, 1], [], []>} : vector<8x32xf32>, vector<32x64xf32>, vector<8x64xf32> -> vector<8x64xf32>
    %8 = vector.broadcast %5 : vector<8x1xf32> to vector<8x64xf32>
    %9 = arith.addf %7, %8 : vector<8x64xf32>
    %cst_7 = arith.constant dense<0xFF800000> : vector<64xf32>
    %10 = vector.multi_reduction <maximumf>, %9, %cst_7 [0] : vector<8x64xf32> to vector<64xf32>
    %11 = vector.shape_cast %10 : vector<64xf32> to vector<1x64xf32>
    %12 = vector.broadcast %11 : vector<1x64xf32> to vector<8x64xf32>
    %13 = arith.subf %9, %12 : vector<8x64xf32>
    %14 = math.exp %13 : vector<8x64xf32>
    %cst_8 = arith.constant dense<0.000000e+00> : vector<64xf32>
    %15 = vector.multi_reduction <add>, %14, %cst_8 [0] : vector<8x64xf32> to vector<64xf32>
    %16 = vector.shape_cast %15 : vector<64xf32> to vector<1x64xf32>
    %17 = tpu.reciprocal %16 : vector<1x64xf32> -> vector<1x64xf32>
    %18 = vector.broadcast %17 : vector<1x64xf32> to vector<8x64xf32>
    %19 = arith.mulf %14, %18 : vector<8x64xf32>
    %c0_9 = arith.constant 0 : index
    %c0_10 = arith.constant 0 : index
    %20 = vector.load %arg7[%c0_9, %c0_10] : memref<8x32xf32, #tpu.memory_space<vmem>>, vector<8x32xf32>
    %cst_11 = arith.constant dense<0.000000e+00> : vector<8x32xf32>
    %21 = tpu.matmul %19, %4, %cst_11 {dimension_numbers = #tpu.dot_dimension_numbers<[1], [1], [0], [0], [0, 0, 1, 0], [], []>} : vector<8x64xf32>, vector<32x64xf32>, vector<8x32xf32> -> vector<8x32xf32>
    %22 = arith.addf %20, %21 : vector<8x32xf32>
    %c0_12 = arith.constant 0 : index
    %c0_13 = arith.constant 0 : index
    %23 = vector.load %arg7[%c0_12, %c0_13] : memref<8x32xf32, #tpu.memory_space<vmem>>, vector<8x32xf32>
    tpu.vector_store %arg7[%c0_12, %c0_13], %22 {strides = array<i32>} : memref<8x32xf32, #tpu.memory_space<vmem>>, vector<8x32xf32>,
    %c0_14 = arith.constant 0 : index
    %c0_15 = arith.constant 0 : index
    %24 = vector.load %arg8[%c0_14, %c0_15] : memref<8x1xf32, #tpu.memory_space<vmem>>, vector<8x1xf32>
    %cst_16 = arith.constant dense<0.000000e+00> : vector<8xf32>
    %25 = vector.multi_reduction <add>, %19, %cst_16 [1] : vector<8x64xf32> to vector<8xf32>
    %26 = vector.shape_cast %25 : vector<8xf32> to vector<8x1xf32>
    %27 = arith.addf %24, %26 : vector<8x1xf32>
    %c0_17 = arith.constant 0 : index
    %c0_18 = arith.constant 0 : index
    %28 = vector.load %arg8[%c0_17, %c0_18] : memref<8x1xf32, #tpu.memory_space<vmem>>, vector<8x1xf32>
    tpu.vector_store %arg8[%c0_17, %c0_18], %27 {strides = array<i32>} : memref<8x1xf32, #tpu.memory_space<vmem>>, vector<8x1xf32>,
    %c0_i32_19 = arith.constant 0 : i32
    %29 = arith.cmpi eq, %arg1, %c0_i32_19 : i32
    %30 = arith.extui %29 : i1 to i32
    %c0_i32_20 = arith.constant 0 : i32
    %31 = arith.cmpi ne, %30, %c0_i32_20 : i32
    scf.if %31 {
      %c0_21 = arith.constant 0 : index
      %c0_22 = arith.constant 0 : index
      %32 = vector.load %arg5[%c0_21, %c0_22] : memref<8x32xf32, #tpu.memory_space<vmem>>, vector<8x32xf32>
      %c0_23 = arith.constant 0 : index
      %c0_24 = arith.constant 0 : index
      %33 = vector.load %arg7[%c0_23, %c0_24] : memref<8x32xf32, #tpu.memory_space<vmem>>, vector<8x32xf32>
      %c0_25 = arith.constant 0 : index
      %c0_26 = arith.constant 0 : index
      %34 = vector.load %arg8[%c0_25, %c0_26] : memref<8x1xf32, #tpu.memory_space<vmem>>, vector<8x1xf32>
      %35 = vector.broadcast %34 : vector<8x1xf32> to vector<8x32xf32>
      %36 = arith.mulf %35, %32 : vector<8x32xf32>
      %37 = arith.subf %33, %36 : vector<8x32xf32>
      %38 = arith.mulf %37, %37 : vector<8x32xf32>
      %cst_27 = arith.constant dense<0.000000e+00> : vector<8xf32>
      %39 = vector.multi_reduction <add>, %38, %cst_27 [1] : vector<8x32xf32> to vector<8xf32>
      %40 = vector.shape_cast %39 : vector<8xf32> to vector<8x1xf32>
      %cst_28 = arith.constant 1.000000e-24 : f32
      %41 = vector.broadcast %cst_28 : f32 to vector<8x1xf32>
      %42 = arith.maximumf %40, %41 : vector<8x1xf32>
      %43 = math.rsqrt %42 : vector<8x1xf32>
      %44 = vector.broadcast %43 : vector<8x1xf32> to vector<8x32xf32>
      %45 = arith.mulf %37, %44 : vector<8x32xf32>
      %46 = arith.mulf %45, %45 : vector<8x32xf32>
      %47 = vector.shape_cast %46 : vector<8x32xf32> to vector<1x8x32xf32>
      %cst_29 = arith.constant dense<0.000000e+00> : vector<1xf32>
      %48 = vector.multi_reduction <add>, %47, %cst_29 [1, 2] : vector<1x8x32xf32> to vector<1xf32>
      %49 = vector.shape_cast %48 : vector<1xf32> to vector<1x1x1xf32>
      %50 = vector.extract %49[0, 0, 0] : f32 from vector<1x1x1xf32>
      %51 = vector.broadcast %50 : f32 to vector<1x1xf32>
      %cst_30 = arith.constant 1.000000e-24 : f32
      %52 = vector.broadcast %cst_30 : f32 to vector<1x1xf32>
      %53 = arith.maximumf %51, %52 : vector<1x1xf32>
      %54 = math.rsqrt %53 : vector<1x1xf32>
      %55 = vector.broadcast %54 : vector<1x1xf32> to vector<8x32xf32>
      %56 = arith.mulf %45, %55 : vector<8x32xf32>
      %c0_31 = arith.constant 0 : index
      %c0_32 = arith.constant 0 : index
      %c0_33 = arith.constant 0 : index
      %57 = vector.load %arg6[%c0_31, %c0_32, %c0_33] : memref<1x8x32xf32, #tpu.memory_space<vmem>>, vector<1x8x32xf32>
      %58 = vector.shape_cast %57 : vector<1x8x32xf32> to vector<8x32xf32>
      %59 = vector.shape_cast %56 : vector<8x32xf32> to vector<1x8x32xf32>
      tpu.vector_store %arg6[%c0_31, %c0_32, %c0_33], %59 {strides = array<i32>} : memref<1x8x32xf32, #tpu.memory_space<vmem>>, vector<1x8x32xf32>,
    } else {
    }
    return
  }
  func.func @transform_0(%arg0: i32, %arg1: i32) -> (i32, i32, i32) {
    %c0_i32 = arith.constant 0 : i32
    %c0_i32_0 = arith.constant 0 : i32
    return %arg0, %c0_i32, %arg1 : i32, i32, i32
  }
  func.func @transform_1(%arg0: i32, %arg1: i32) -> (i32, i32) {
    %c0_i32 = arith.constant 0 : i32
    %c0_i32_0 = arith.constant 0 : i32
    %c0_i32_1 = arith.constant 0 : i32
    return %c0_i32, %c0_i32_0 : i32, i32
  }
  func.func @transform_2(%arg0: i32, %arg1: i32) -> (i32, i32) {
    %c0_i32 = arith.constant 0 : i32
    %c0_i32_0 = arith.constant 0 : i32
    %c0_i32_1 = arith.constant 0 : i32
    return %c0_i32, %c0_i32_0 : i32, i32
  }
  func.func @transform_3(%arg0: i32, %arg1: i32) -> (i32, i32) {
    %c0_i32 = arith.constant 0 : i32
    %c0_i32_0 = arith.constant 0 : i32
    %c0_i32_1 = arith.constant 0 : i32
    return %c0_i32, %c0_i32_0 : i32, i32
  }
  func.func @transform_4(%arg0: i32, %arg1: i32) -> (i32, i32, i32) {
    %c0_i32 = arith.constant 0 : i32
    %c0_i32_0 = arith.constant 0 : i32
    %c0_i32_1 = arith.constant 0 : i32
    return %arg0, %c0_i32, %c0_i32_0 : i32, i32, i32
  }
}

</mosaic_0001>

<llo_original>
// kernel: tpu_custom_call.1
$region0: #{tpu_custom_call.1}
  #allocation0 [shape = 'u32[]', space=smem, size = 0x4, offset = 0x4, fixed_abs, tag = 'smem constant byte address 0x4 - core index']
  #allocation1 [shape = 'u32[144,128]{1,0:T(1,128)}', space=vmem, size = 0x12000, scoped, tag = 'internal scratch']
  #allocation2 [shape = 'f32[8,32]{1,0:T(8,128)}', space=vmem, size = 0x1000, scoped, tag = 'scratch operand']
  #allocation3 [shape = 'f32[8,1]{1,0:T(8,128)}', space=vmem, size = 0x1000, scoped, tag = 'scratch operand']
  %s0 = inlined_call_operand.hbm [shape: f32[2,32,64], index: 0, kind: input, shape index: {}]
  %s1 = inlined_call_operand.vmem [shape: f32[8,32], index: 1, kind: input, shape index: {}]
  %s2 = inlined_call_operand.vmem [shape: f32[8,1], index: 2, kind: input, shape index: {}]
  %s3 = inlined_call_operand.vmem [shape: f32[8,32], index: 3, kind: input, shape index: {}]
  %s4 = inlined_call_operand.hbm [shape: f32[2,8,32], index: 4, kind: output, shape index: {}]
  %s5 = sld [smem:[#allocation0]]
  $region61: #{tpu_custom_call.1} parent=0
    _
  %s7 = ssub.s32 1, %s5
  %s8 = scalar_select 0, %s7, %s5
  $region1: #{tpu_custom_call.1} parent=0
    #allocation4 [shape = 'u8[32768]{0}', space=vmem, size = 0x8000, scoped, tag = 'input window, operand 0']
    #allocation5 [shape = 's32[2]{0}', space=sflag, size = 0x8, scoped, tag = 'scoped memory for tpu_custom_call.1']
    #allocation6 [shape = 's32[2]{0}', space=sflag, size = 0x8, scoped, tag = 'scoped memory for tpu_custom_call.1']
    #allocation7 [shape = 'u8[8192]{0}', space=vmem, size = 0x2000, scoped, tag = 'output window, operand 0']
    %9 = vsyncpa [#allocation5], 0
    %s10 = scalar_lea.sflag [#allocation5], 1
    %11 = vsyncpa %s10, 0
    %12 = vsyncpa [#allocation6], 0
    %s13 = scalar_lea.sflag [#allocation6], 1
    %14 = vsyncpa %s13, 0
    loop: start=0, step=1, limit=4
    $region2: #{tpu_custom_call.1} parent=1 // loop_pre_header
      _
    $region3: #{tpu_custom_call.1} parent=1 // loop_header
      %s16 = sphi 0, %s20
      %p17 = scmp.ge.s32.totalorder %s16, 4
      %s23 = sphi 0, %s35
      %s24 = sphi 0, %s31
      %s25 = sphi 0, %s23
      %s26 = sphi 0, %s24
      %s27 = sphi 0, %s25
      %s28 = sphi 0, %s26
      %s40 = sphi 0, %s42
      %s43 = sphi 0, %s40
      %s44 = sphi 0, %s43
      %s60 = sphi 0, %s44
      %s64 = sphi 0, %s64
      %s66 = sphi 0, %s64
      %s67 = sphi 0, %s66
      %s81 = sphi 0, %s67
      %s85 = sphi 0, %s85
      %s87 = sphi 0, %s85
      %s88 = sphi 0, %s87
      %s102 = sphi 0, %s88
      %s106 = sphi 0, %s106
      %s108 = sphi 0, %s106
      %s109 = sphi 0, %s108
      %s123 = sphi 0, %s109
      %s129 = sphi 0, %s131
      %s132 = sphi 0, %s129
      %s133 = sphi 0, %s132
      %s149 = sphi 0, %s133
    $region4: #{tpu_custom_call.1} parent=1 // loop_header_branch
      %19 = sbr.rel (%p17) target = $region8
    $region5: #{tpu_custom_call.1} parent=1 // loop_body
      %s21 = ssub.s32 %s16, 1
      %s22 = ssub.s32 %s16, 2
      %s29 = sadd.s32 1, %s24
      %p30 = scmp.ge.s32.totalorder %s29, 1
      %s31 = scalar_select %p30, 0, %s29
      %s32 = sadd.s32 1, %s23
      %s33 = scalar_select %p30, %s32, %s23
      %p34 = scmp.ge.s32.totalorder %s33, 2
      %s35 = scalar_select %p34, 0, %s33
      %s36 = ssub.s32 %s23, %s35
      %s37 = ssub.s32 %s24, %s31
      %s38 = sor.u32 %s36, %s37
      %p39 = scmp.eq.s32.totalorder %s38, 0
      %s41 = sadd.s32 %s40, 1
      %s42 = scalar_select %p39, %s40, %s41
      %p45 = pneg %p39
      %p46 = scmp.eq.s32.totalorder %s16, 1
      %p47 = por %p45, %p46
      %p48 = scmp.ne.s32.totalorder %s40, %s43
      %p49 = scmp.eq.s32.totalorder %s16, 0
      %p50 = por %p48, %p49
      %p51 = scmp.ne.s32.totalorder %s40, %s43
      %p52 = scmp.eq.s32.totalorder %s21, 1
      %p53 = por %p51, %p52
      %p54 = scmp.ne.s32.totalorder %s43, %s44
      %p55 = scmp.eq.s32.totalorder %s21, 0
      %p56 = por %p54, %p55
      %p57 = scmp.ne.s32.totalorder %s43, %s44
      %p58 = scmp.eq.s32.totalorder %s22, 1
      %p59 = por %p57, %p58
      %p61 = scmp.ne.s32.totalorder %s44, %s60
      %p62 = scmp.eq.s32.totalorder %s22, 0
      %p63 = por %p61, %p62
      %s65 = sadd.s32 %s64, 1
      %p68 = scmp.eq.s32.totalorder %s16, 1
      %p69 = scmp.ne.s32.totalorder %s64, %s66
      %p70 = scmp.eq.s32.totalorder %s16, 0
      %p71 = por %p69, %p70
      %p72 = scmp.ne.s32.totalorder %s64, %s66
      %p73 = scmp.eq.s32.totalorder %s21, 1
      %p74 = por %p72, %p73
      %p75 = scmp.ne.s32.totalorder %s66, %s67
      %p76 = scmp.eq.s32.totalorder %s21, 0
      %p77 = por %p75, %p76
      %p78 = scmp.ne.s32.totalorder %s66, %s67
      %p79 = scmp.eq.s32.totalorder %s22, 1
      %p80 = por %p78, %p79
      %p82 = scmp.ne.s32.totalorder %s67, %s81
      %p83 = scmp.eq.s32.totalorder %s22, 0
      %p84 = por %p82, %p83
      %s86 = sadd.s32 %s85, 1
      %p89 = scmp.eq.s32.totalorder %s16, 1
      %p90 = scmp.ne.s32.totalorder %s85, %s87
      %p91 = scmp.eq.s32.totalorder %s16, 0
      %p92 = por %p90, %p91
      %p93 = scmp.ne.s32.totalorder %s85, %s87
      %p94 = scmp.eq.s32.totalorder %s21, 1
      %p95 = por %p93, %p94
      %p96 = scmp.ne.s32.totalorder %s87, %s88
      %p97 = scmp.eq.s32.totalorder %s21, 0
      %p98 = por %p96, %p97
      %p99 = scmp.ne.s32.totalorder %s87, %s88
      %p100 = scmp.eq.s32.totalorder %s22, 1
      %p101 = por %p99, %p100
      %p103 = scmp.ne.s32.totalorder %s88, %s102
      %p104 = scmp.eq.s32.totalorder %s22, 0
      %p105 = por %p103, %p104
      %s107 = sadd.s32 %s106, 1
      %p110 = scmp.eq.s32.totalorder %s16, 1
      %p111 = scmp.ne.s32.totalorder %s106, %s108
      %p112 = scmp.eq.s32.totalorder %s16, 0
      %p113 = por %p111, %p112
      %p114 = scmp.ne.s32.totalorder %s106, %s108
      %p115 = scmp.eq.s32.totalorder %s21, 1
      %p116 = por %p114, %p115
      %p117 = scmp.ne.s32.totalorder %s108, %s109
      %p118 = scmp.eq.s32.totalorder %s21, 0
      %p119 = por %p117, %p118
      %p120 = scmp.ne.s32.totalorder %s108, %s109
      %p121 = scmp.eq.s32.totalorder %s22, 1
      %p122 = por %p120, %p121
      %p124 = scmp.ne.s32.totalorder %s109, %s123
      %p125 = scmp.eq.s32.totalorder %s22, 0
      %p126 = por %p124, %p125
      %s127 = ssub.s32 %s23, %s35
      %p128 = scmp.eq.s32.totalorder %s127, 0
      %s130 = sadd.s32 %s129, 1
      %s131 = scalar_select %p128, %s129, %s130
      %p134 = pneg %p128
      %p135 = scmp.eq.s32.totalorder %s16, 1
      %p136 = por %p134, %p135
      %p137 = scmp.ne.s32.totalorder %s129, %s132
      %p138 = scmp.eq.s32.totalorder %s16, 0
      %p139 = por %p137, %p138
      %p140 = scmp.ne.s32.totalorder %s129, %s132
      %p141 = scmp.eq.s32.totalorder %s21, 1
      %p142 = por %p140, %p141
      %p143 = scmp.ne.s32.totalorder %s132, %s133
      %p144 = scmp.eq.s32.totalorder %s21, 0
      %p145 = por %p143, %p144
      %p146 = scmp.ne.s32.totalorder %s132, %s133
      %p147 = scmp.eq.s32.totalorder %s22, 1
      %p148 = por %p146, %p147
      %p150 = scmp.ne.s32.totalorder %s133, %s149
      %p151 = scmp.eq.s32.totalorder %s22, 0
      %p152 = por %p150, %p151
      %p153 = scmp.le.s32.totalorder 1, %s16
      %p154 = scmp.lt.s32.totalorder %s16, 3
      %p155 = pnand %p153, %p154
      %p156 = pneg %p155
      // Predicated region
      $region9: #{tpu_custom_call.1} parent=5 // pred_check
        _
      $region10: #{tpu_custom_call.1} parent=5 // pred_check_branch
        %158 = sbr.rel (%p155) target = $region12
      $region11: #{tpu_custom_call.1} parent=5 // pred_region
        %s159 = ssub.s32 %s16, 1
        // Predicated region
        $region13: #{tpu_custom_call.1} parent=11 // pred_check
          %p160 = pneg %p77
        $region14: #{tpu_custom_call.1} parent=11 // pred_check_branch
          %162 = sbr.rel (%p160) target = $region16
        $region15: #{tpu_custom_call.1} parent=11 // pred_region
          _
        $region16: #{tpu_custom_call.1} parent=11 // pred_fallthru
          _
        // Predicated region
        $region17: #{tpu_custom_call.1} parent=11 // pred_check
          %p163 = pneg %p98
        $region18: #{tpu_custom_call.1} parent=11 // pred_check_branch
          %165 = sbr.rel (%p163) target = $region20
        $region19: #{tpu_custom_call.1} parent=11 // pred_region
          _
        $region20: #{tpu_custom_call.1} parent=11 // pred_fallthru
          _
        // Predicated region
        $region21: #{tpu_custom_call.1} parent=11 // pred_check
          %p166 = pneg %p119
        $region22: #{tpu_custom_call.1} parent=11 // pred_check_branch
          %168 = sbr.rel (%p166) target = $region24
        $region23: #{tpu_custom_call.1} parent=11 // pred_region
          _
        $region24: #{tpu_custom_call.1} parent=11 // pred_fallthru
          _
      $region12: #{tpu_custom_call.1} parent=5 // pred_fallthru
        _
      %p169 = scmp.lt.s32.totalorder %s16, 2
      // Predicated region
      $region25: #{tpu_custom_call.1} parent=5 // pred_check
        %p170 = pneg %p169
      $region26: #{tpu_custom_call.1} parent=5 // pred_check_branch
        %172 = sbr.rel (%p170) target = $region28
      $region27: #{tpu_custom_call.1} parent=5 // pred_region
        // Predicated region
        $region29: #{tpu_custom_call.1} parent=27 // pred_check
          %p173 = pneg %p50
        $region30: #{tpu_custom_call.1} parent=27 // pred_check_branch
          %175 = sbr.rel (%p173) target = $region32
        $region31: #{tpu_custom_call.1} parent=27 // pred_region
          %s176 = sand.u32 %s40, 1
          %s177 = scalar_lea.sflag [#allocation5], %s176
          %s178 = sand.u32 %s40, 1
          %s179 = smul.addr %s178, 32
          %s180 = scalar_lea.vmem [#allocation4], %s179
          %s182 = ssub.s32 512, 512
          %183 = vsyncadd %s177, %s182
          %s184 = smul.addr %s23, 4
          %s185 = sadd.s32 %s24, %s184
          %s186 = smul.addr %s185, 128
          %s187 = scalar_lea.hbm %s0, %s186
          %s188 = sshll.u32 %s180, 4
          %s189 = int_to_ptr.vmem [resolvable:$true] %s188
          %194 = dma.hbm_to_vmem [thread:$0]  %s187, 512, %s189, %s177, 128, 128, 8
        $region32: #{tpu_custom_call.1} parent=27 // pred_fallthru
          _
      $region28: #{tpu_custom_call.1} parent=5 // pred_fallthru
        _
      %p195 = scmp.le.s32.totalorder 1, %s16
      %p196 = scmp.lt.s32.totalorder %s16, 3
      %p197 = pnand %p195, %p196
      %p198 = pneg %p197
      // Predicated region
      $region33: #{tpu_custom_call.1} parent=5 // pred_check
        _
      $region34: #{tpu_custom_call.1} parent=5 // pred_check_branch
        %200 = sbr.rel (%p197) target = $region36
      $region35: #{tpu_custom_call.1} parent=5 // pred_region
        %s201 = ssub.s32 %s16, 1
        %s202 = sand.u32 %s43, 1
        %s203 = scalar_lea.sflag [#allocation5], %s202
        %s204 = sand.u32 %s43, 1
        %s205 = smul.addr %s204, 32
        %s206 = scalar_lea.vmem [#allocation4], %s205
        // Predicated region
        $region37: #{tpu_custom_call.1} parent=35 // pred_check
          %p207 = pneg %p56
        $region38: #{tpu_custom_call.1} parent=35 // pred_check_branch
          %209 = sbr.rel (%p207) target = $region40
        $region39: #{tpu_custom_call.1} parent=35 // pred_region
          %210 = dma.done %s203, 512
        $region40: #{tpu_custom_call.1} parent=35 // pred_fallthru
          _
        %s211 = sand.u32 %s43, 1
        %s212 = scalar_lea.sflag [#allocation5], %s211
        %s213 = sand.u32 %s43, 1
        %s214 = smul.addr %s213, 32
        %s215 = scalar_lea.vmem [#allocation4], %s214
        %p216 = pneg %p56
        %p217 = pneg %p53
        %p218 = pneg %p77
        %p219 = pneg %p74
        %p220 = pneg %p98
        %p221 = pneg %p95
        %p222 = pneg %p119
        %p223 = pneg %p116
        %p224 = pneg %p145
        %p225 = pneg %p142
        %s226 = sand.u32 %s132, 1
        %s227 = scalar_lea.sflag [#allocation6], %s226
        %s228 = sand.u32 %s132, 1
        %s229 = smul.addr %s228, 8
        %s230 = scalar_lea.vmem [#allocation7], %s229
        %p231 = scmp.eq.s32.totalorder %s26, 0
        // Predicated region
        $region41: #{tpu_custom_call.1} parent=35 // pred_check
          %p232 = pneg %p231
        $region42: #{tpu_custom_call.1} parent=35 // pred_check_branch
          %234 = sbr.rel (%p232) target = $region44
        $region43: #{tpu_custom_call.1} parent=35 // pred_region
          %vm235 = vcmask 261120
          %236 = vst.msk [vmem:[#allocation2] sm:$0xff] %vm235, 0.0
          %vm237 = vcmask 7168
          %238 = vst.msk [vmem:[#allocation3] sm:$0xff] %vm237, 0.0
        $region44: #{tpu_custom_call.1} parent=35 // pred_fallthru
          _
        %v239 = vld [vmem:[%s206] sm:$0xff]
        %v240 = vld [vmem:[%s206 + $0x8] sm:$0xff]
        %v241 = vld [vmem:[%s206 + $0x10] sm:$0xff]
        %v242 = vld [vmem:[%s206 + $0x18] sm:$0xff]
        %v243 = vld [vmem:[%s2] sm:$0xff]
        %v244 = vld [vmem:[%s1] sm:$0xff]
        %246 = vset.pattern.permute.xlu0 0
        %247 = vperm.xlu0 %246, %v243
        %v248 = vpop.permute.xlu0 %247
        %vm250 = vcmask 261120
        %v252 = vsel %vm250, %v244, 0
        %254 = vmatprep.subr.mxu0 0.0
        %255 = vmatpush1.msra.mxu0 %v239
        %256 = vmatprep.subr.mxu0 0.0
        %257 = vmatpush1.msra.mxu0 %v240
        %258 = vmatprep.subr.mxu0 0.0
        %259 = vmatpush1.msra.mxu0 %v241
        %260 = vmatprep.subr.mxu0 0.0
        %261 = vmatpush1.msra.mxu0 %v242
        %262 = vmatprep.subr.mxu0 0.0
        %263 = vmatpush1.msra.mxu0 0.0
        %264 = vmatprep.subr.mxu0 0.0
        %265 = vmatpush1.msra.mxu0 0.0
        %266 = vmatprep.subr.mxu0 0.0
        %267 = vmatpush1.msra.mxu0 0.0
        %268 = vmatprep.subr.mxu0 0.0
        %269 = vmatpush1.msra.mxu0 0.0
        %270 = vmatprep.subr.mxu0 0.0
        %271 = vmatpush1.msra.mxu0 0.0
        %272 = vmatprep.subr.mxu0 0.0
        %273 = vmatpush1.msra.mxu0 0.0
        %274 = vmatprep.subr.mxu0 0.0
        %275 = vmatpush1.msra.mxu0 0.0
        %276 = vmatprep.subr.mxu0 0.0
        %277 = vmatpush1.msra.mxu0 0.0
        %278 = vmatprep.subr.mxu0 0.0
        %279 = vmatpush1.msra.mxu0 0.0
        %280 = vmatprep.subr.mxu0 0.0
        %281 = vmatpush1.msra.mxu0 0.0
        %282 = vmatprep.subr.mxu0 0.0
        %283 = vmatpush1.msra.mxu0 0.0
        %284 = vmatprep.subr.mxu0 0.0
        %285 = vmatpush1.msra.mxu0 0.0
        %286 = vmatprep.subr.mxu0 0.0
        %287 = vmatpush1.msra.mxu0 0.0
        %288 = vmatprep.subr.mxu0 0.0
        %289 = vmatpush1.msra.mxu0 0.0
        %290 = vmatprep.subr.mxu0 0.0
        %291 = vmatpush1.msra.mxu0 0.0
        %292 = vmatprep.subr.mxu0 0.0
        %293 = vmatpush1.msra.mxu0 0.0
        %294 = vmatprep.subr.mxu0 0.0
        %295 = vmatpush1.msra.mxu0 0.0
        %296 = vmatprep.subr.mxu0 0.0
        %297 = vmatpush1.msra.mxu0 0.0
        %298 = vmatprep.subr.mxu0 0.0
        %299 = vmatpush1.msra.mxu0 0.0
        %300 = vmatprep.subr.mxu0 0.0
        %301 = vmatpush1.msra.mxu0 0.0
        %302 = vmatprep.subr.mxu0 0.0
        %303 = vmatpush1.msra.mxu0 0.0
        %304 = vmatprep.subr.mxu0 0.0
        %305 = vmatpush1.msra.mxu0 0.0
        %306 = vmatprep.subr.mxu0 0.0
        %307 = vmatpush1.msra.mxu0 0.0
        %308 = vmatprep.subr.mxu0 0.0
        %309 = vmatpush1.msra.mxu0 0.0
        %310 = vmatprep.subr.mxu0 0.0
        %311 = vmatpush1.msra.mxu0 0.0
        %312 = vmatprep.subr.mxu0 0.0
        %313 = vmatpush1.msra.mxu0 0.0
        %314 = vmatprep.subr.mxu0 0.0
        %315 = vmatpush1.msra.mxu0 0.0
        %316 = vmatprep.subr.mxu0 0.0
        %317 = vmatpush1.msra.mxu0 0.0
        %318 = vmatprep.mubr.f32.mxu0 0.0
        %319 = vmatmul.mubr.f32.gmra.mrb[0].mxu0 %v252
        %v320 = vpop.f32.mrb[0].mxu0
        %v321 = vadd.f32 %v248, %v320
        %v322 = vpop.f32.mrb[0].mxu0
        %323 = vdwg.mxu0
        %vm324 = vcmask 523264
        %v325 = vsel %vm324, %v321, -inf
        %v326 = vrot.slane %v325, 4
        %v327 = vmax.f32 %v325, %v326
        %v328 = vrot.slane %v327, 2
        %v329 = vmax.f32 %v327, %v328
        %v330 = vrot.slane %v329, 1
        %v331 = vmax.f32 %v329, %v330
        %v332 = vsub.f32 %v321, %v331
        %v333 = vmul.f32 %v332, 1.442695
        %v334 = vpow.pop %v333
        %v335 = vsel %vm324, %v334, 0.0
        %v336 = vrot.slane %v335, 4
        %v337 = vadd.f32 %v335, %v336
        %v338 = vrot.slane %v337, 2
        %v339 = vadd.f32 %v337, %v338
        %v340 = vrot.slane %v339, 1
        %v341 = vadd.f32 %v339, %v340
        %v342 = vrcp.pop %v341
        %v343 = vmul.f32 %v334, %v342
        %v344 = vld [vmem:[#allocation2] sm:$0xff]
        %v346 = vsel %vm324, %v343, 0
        %v349 = vsel %vm324, %v239, 0
        %v352 = vsel %vm324, %v240, 0
        %v355 = vsel %vm324, %v241, 0
        %v358 = vsel %vm324, %v242, 0
        %360 = vmatprep.subr.mxu0 0.0
        %361 = vmatpush1.xpose.msra.mxu0 %v349
        %362 = vmatprep.subr.mxu0 0.0
        %363 = vmatpush1.xpose.msra.mxu0 %v352
        %364 = vmatprep.subr.mxu0 0.0
        %365 = vmatpush1.xpose.msra.mxu0 %v355
        %366 = vmatprep.subr.mxu0 0.0
        %367 = vmatpush1.xpose.msra.mxu0 %v358
        %368 = vmatprep.subr.mxu0 0.0
        %369 = vmatpush1.xpose.msra.mxu0 0.0
        %370 = vmatprep.subr.mxu0 0.0
        %371 = vmatpush1.xpose.msra.mxu0 0.0
        %372 = vmatprep.subr.mxu0 0.0
        %373 = vmatpush1.xpose.msra.mxu0 0.0
        %374 = vmatprep.subr.mxu0 0.0
        %375 = vmatpush1.xpose.msra.mxu0 0.0
        %376 = vmatprep.subr.mxu0 0.0
        %377 = vmatpush1.xpose.msra.mxu0 0.0
        %378 = vmatprep.subr.mxu0 0.0
        %379 = vmatpush1.xpose.msra.mxu0 0.0
        %380 = vmatprep.subr.mxu0 0.0
        %381 = vmatpush1.xpose.msra.mxu0 0.0
        %382 = vmatprep.subr.mxu0 0.0
        %383 = vmatpush1.xpose.msra.mxu0 0.0
        %384 = vmatprep.subr.mxu0 0.0
        %385 = vmatpush1.xpose.msra.mxu0 0.0
        %386 = vmatprep.subr.mxu0 0.0
        %387 = vmatpush1.xpose.msra.mxu0 0.0
        %388 = vmatprep.subr.mxu0 0.0
        %389 = vmatpush1.xpose.msra.mxu0 0.0
        %390 = vmatprep.subr.mxu0 0.0
        %391 = vmatpush1.xpose.msra.mxu0 0.0
        %392 = vmatprep.subr.mxu0 0.0
        %393 = vmatpush1.xpose.msra.mxu0 0.0
        %394 = vmatprep.subr.mxu0 0.0
        %395 = vmatpush1.xpose.msra.mxu0 0.0
        %396 = vmatprep.subr.mxu0 0.0
        %397 = vmatpush1.xpose.msra.mxu0 0.0
        %398 = vmatprep.subr.mxu0 0.0
        %399 = vmatpush1.xpose.msra.mxu0 0.0
        %400 = vmatprep.subr.mxu0 0.0
        %401 = vmatpush1.xpose.msra.mxu0 0.0
        %402 = vmatprep.subr.mxu0 0.0
        %403 = vmatpush1.xpose.msra.mxu0 0.0
        %404 = vmatprep.subr.mxu0 0.0
        %405 = vmatpush1.xpose.msra.mxu0 0.0
        %406 = vmatprep.subr.mxu0 0.0
        %407 = vmatpush1.xpose.msra.mxu0 0.0
        %408 = vmatprep.subr.mxu0 0.0
        %409 = vmatpush1.xpose.msra.mxu0 0.0
        %410 = vmatprep.subr.mxu0 0.0
        %411 = vmatpush1.xpose.msra.mxu0 0.0
        %412 = vmatprep.subr.mxu0 0.0
        %413 = vmatpush1.xpose.msra.mxu0 0.0
        %414 = vmatprep.subr.mxu0 0.0
        %415 = vmatpush1.xpose.msra.mxu0 0.0
        %416 = vmatprep.subr.mxu0 0.0
        %417 = vmatpush1.xpose.msra.mxu0 0.0
        %418 = vmatprep.subr.mxu0 0.0
        %419 = vmatpush1.xpose.msra.mxu0 0.0
        %420 = vmatprep.subr.mxu0 0.0
        %421 = vmatpush1.xpose.msra.mxu0 0.0
        %422 = vmatprep.subr.mxu0 0.0
        %423 = vmatpush1.xpose.msra.mxu0 0.0
        %424 = vmatprep.mubr.f32.mxu0 0.0
        %425 = vmatmul.mubr.f32.gmra.mrb[0].mxu0 %v346
        %v426 = vpop.f32.mrb[0].mxu0
        %v427 = vadd.f32 0.0, %v426
        %v428 = vpop.f32.mrb[0].mxu0
        %429 = vdwg.mxu0
        %v430 = vadd.f32 %v344, %v427
        %431 = vst.msk [vmem:[#allocation2] sm:$0xff] %vm250, %v430
        %v432 = vld [vmem:[#allocation3] sm:$0xff]
        %v433 = vsel %vm324, %v343, 0.0
        %434 = vadd.xlane.f32.xlu0 %v433
        %v435 = vpop.xlane.xlu0 %434
        %v436 = vadd.f32 %v432, %v435
        %vm437 = vcmask 7168
        %438 = vst.msk [vmem:[#allocation3] sm:$0xff] %vm437, %v436
        // Predicated region
        $region45: #{tpu_custom_call.1} parent=35 // pred_check
          %p439 = pneg %p231
        $region46: #{tpu_custom_call.1} parent=35 // pred_check_branch
          %441 = sbr.rel (%p439) target = $region48
        $region47: #{tpu_custom_call.1} parent=35 // pred_region
          %v442 = vld [vmem:[%s3] sm:$0xff]
          %v443 = vld [vmem:[#allocation2] sm:$0xff]
          %v444 = vld [vmem:[#allocation3] sm:$0xff]
          %446 = vset.pattern.permute.xlu0 0
          %447 = vperm.xlu0 %446, %v444
          %v448 = vpop.permute.xlu0 %447
          %v450 = vmul.f32 %v448, %v442
          %v451 = vsub.f32 %v443, %v450
          %v452 = vmul.f32 %v451, %v451
          %v453 = vsel %vm250, %v452, 0.0
          %454 = vadd.xlane.f32.xlu0 %v453
          %v455 = vpop.xlane.xlu0 %454
          %v456 = vmax.f32 %v455, 1e-24
          %v457 = vrsqrt.pop %v456
          %v458 = vmul.f32 %v451, %v457
          %v459 = vmul.f32 %v458, %v458
          %v460 = vsel %vm250, %v459, 0.0
          %461 = vadd.xlane.f32.xlu0 %v460
          %v462 = vpop.xlane.xlu0 %461
          %v463 = vrot.slane %v462, 4
          %v464 = vadd.f32 %v462, %v463
          %v465 = vrot.slane %v464, 2
          %v466 = vadd.f32 %v464, %v465
          %v467 = vrot.slane %v466, 1
          %v468 = vadd.f32 %v466, %v467
          %s469 = vtos %v468
          %v470 = vstv %s469
          %v471 = vmax.f32 %v470, 1e-24
          %v472 = vrsqrt.pop %v471
          %v473 = vmul.f32 %v458, %v472
          %474 = vst.msk [vmem:[%s230] sm:$0xff] %vm250, %v473
        $region48: #{tpu_custom_call.1} parent=35 // pred_fallthru
          _
        %s475 = sand.u32 %s132, 1
        %s476 = scalar_lea.sflag [#allocation6], %s475
        %s477 = sand.u32 %s132, 1
        %s478 = smul.addr %s477, 8
        %s479 = scalar_lea.vmem [#allocation7], %s478
        // Predicated region
        $region49: #{tpu_custom_call.1} parent=35 // pred_check
          %p480 = pneg %p142
        $region50: #{tpu_custom_call.1} parent=35 // pred_check_branch
          %482 = sbr.rel (%p480) target = $region52
        $region51: #{tpu_custom_call.1} parent=35 // pred_region
          %s484 = ssub.s32 128, 128
          %485 = vsyncadd %s476, %s484
          %s486 = smul.addr %s25, 128
          %s487 = scalar_lea.hbm %s4, %s486
          %s489 = sshll.u32 %s479, 4
          %s490 = int_to_ptr.vmem [resolvable:$true] %s489
          %492 = dma.vmem_to_hbm [thread:$0]  %s490, 128, %s487, %s476
        $region52: #{tpu_custom_call.1} parent=35 // pred_fallthru
          _
      $region36: #{tpu_custom_call.1} parent=5 // pred_fallthru
        _
      %p493 = scmp.le.s32.totalorder 2, %s16
      // Predicated region
      $region53: #{tpu_custom_call.1} parent=5 // pred_check
        %p494 = pneg %p493
      $region54: #{tpu_custom_call.1} parent=5 // pred_check_branch
        %496 = sbr.rel (%p494) target = $region56
      $region55: #{tpu_custom_call.1} parent=5 // pred_region
        %s497 = ssub.s32 %s16, 2
        // Predicated region
        $region57: #{tpu_custom_call.1} parent=55 // pred_check
          %p498 = pneg %p148
        $region58: #{tpu_custom_call.1} parent=55 // pred_check_branch
          %500 = sbr.rel (%p498) target = $region60
        $region59: #{tpu_custom_call.1} parent=55 // pred_region
          %s501 = sand.u32 %s133, 1
          %s502 = scalar_lea.sflag [#allocation6], %s501
          %s503 = sand.u32 %s133, 1
          %s504 = smul.addr %s503, 8
          %s505 = scalar_lea.vmem [#allocation7], %s504
          %506 = dma.done %s502, 128
        $region60: #{tpu_custom_call.1} parent=55 // pred_fallthru
          _
      $region56: #{tpu_custom_call.1} parent=5 // pred_fallthru
        _
    $region6: #{tpu_custom_call.1} parent=1 // loop_footer
      %s20 = sadd.s32 1, %s16
    $region7: #{tpu_custom_call.1} parent=1 // loop_footer_branch
      %15 = sbr.rel target = $region3
    $region8: #{tpu_custom_call.1} parent=1 // loop_exit
      _
    %507 = vsyncpa [#allocation5], 1
    %s508 = scalar_lea.sflag [#allocation5], 1
    %509 = vsyncpa %s508, 1
    %510 = vsyncpa [#allocation6], 1
    %s511 = scalar_lea.sflag [#allocation6], 1
    %512 = vsyncpa %s511, 1

</llo_original>
